<compile_context>
chip_gen: v5e
topology: v5e:2x2
jax: 0.10.0
libtpu: 0.0.40
codegen_flags: <defaults>
</compile_context>

<pallas_src>
import functools
import math

import jax
import jax.numpy as jnp
import numpy as np
from jax.experimental import pallas as pl
from jax.experimental.pallas import tpu as pltpu

P_DROP = 0.1
INV_SQRT2 = 1.0 / math.sqrt(2.0)


def _keep_threshold_u32(p_drop):
    # keep iff bits < threshold, with P(keep) = threshold / 2^32 = 1 - p_drop
    return np.uint32(min(int(round((1.0 - p_drop) * 2.0 ** 32)), 2 ** 32 - 1))


def _dropout_gelu_kernel(x_ref, bits_ref, o_ref, *, keep_threshold, inv_keep):
    x = x_ref[...].astype(jnp.float32)

    # --- Dropout (training mode): integer threshold compare + select ---
    keep = bits_ref[...] < jnp.uint32(keep_threshold)
    y = jnp.where(keep, x * jnp.float32(inv_keep), jnp.float32(0.0))

    # --- GELU (exact, erf-based; matches torch.nn.GELU default) ---
    g = 0.5 * y * (1.0 + jax.lax.erf(y * jnp.float32(INV_SQRT2)))

    o_ref[...] = g.astype(o_ref.dtype)


def _pick_tile_rows(m_rows, h, itemsize, *, vmem_budget_bytes=20 << 20):
    """Rows per tile: big enough to amortize per-step overhead, small enough
    that (x + bits + out) double-buffered stays within the VMEM budget."""
    per_row = 2 * h * (itemsize + 4 + itemsize)  # 2 buffers * (x, u32 bits, out)
    rows = vmem_budget_bytes // max(per_row, 1)
    rows = int(max(8, min(rows, 1024)))
    rows = (rows // 8) * 8                       # sublane multiple
    if m_rows <= rows:
        return int(((m_rows + 7) // 8) * 8)      # one tile covers everything
    return rows


@functools.partial(jax.jit, static_argnames=("p_drop",))
def dropout_gelu(x, key, *, p_drop=P_DROP):
    """x: (..., H). Returns gelu(dropout_{p}(x)) with training-mode dropout."""
    orig_shape = x.shape
    h = orig_shape[-1]
    m = int(np.prod(orig_shape[:-1]))
    x2 = x.reshape(m, h)

    # Random bits for the dropout mask (generated outside the kernel; the
    # TPU hardware PRNG does not lower in CPU/interpret runs).
    bits = jax.random.bits(key, (m, h), dtype=jnp.uint32)

    tile_rows = _pick_tile_rows(m, h, x.dtype.itemsize)
    m_pad = ((m + tile_rows - 1) // tile_rows) * tile_rows
    if m_pad != m:
        pad = m_pad - m
        x2 = jnp.pad(x2, ((0, pad), (0, 0)))
        bits = jnp.pad(bits, ((0, pad), (0, 0)))

    block = (tile_rows, h)
    spec = pl.BlockSpec(block, lambda i: (i, 0))

    kernel = functools.partial(
        _dropout_gelu_kernel,
        keep_threshold=int(_keep_threshold_u32(p_drop)),
        inv_keep=1.0 / (1.0 - p_drop),
    )

    out = pl.pallas_call(
        kernel,
        out_shape=jax.ShapeDtypeStruct((m_pad, h), x.dtype),
        grid=(m_pad // tile_rows,),
        in_specs=[spec, spec],
        out_specs=spec,
        compiler_params=pltpu.CompilerParams(
            dimension_semantics=("parallel",),   # tiles are independent
            vmem_limit_bytes=32 * 1024 * 1024,
        ),
    )(x2, bits)

    return out[:m].reshape(orig_shape)


if __name__ == "__main__":
    key = jax.random.PRNGKey(0)
    kx, kdrop = jax.random.split(key)
    B, S, H = 2, 8, 128
    x = jax.random.normal(kx, (B, S, H), dtype=jnp.float32)

    out = dropout_gelu(x, kdrop)
    out = jax.block_until_ready(out)

    # Pure-JAX reference using the same random-bit stream.
    m = B * S
    bits = jax.random.bits(kdrop, (m, H), dtype=jnp.uint32)
    keep = bits < _keep_threshold_u32(P_DROP)
    y = jnp.where(keep, x.reshape(m, H) * np.float32(1.0 / (1.0 - P_DROP)),
                  np.float32(0.0))
    ref = (0.5 * y * (1.0 + jax.lax.erf(y * np.float32(INV_SQRT2)))).reshape(B, S, H)

    assert out.shape == (B, S, H)
    assert out.dtype == jnp.float32
    assert bool(jnp.all(jnp.isfinite(out)))
    np.testing.assert_allclose(np.asarray(out), np.asarray(ref), rtol=2e-5, atol=2e-5)
    print("KERNEL_OK")
</pallas_src>

<mosaic_0001>
module attributes {stable_mosaic.version = 11 : i64} {
  func.func @_dropout_gelu_kernel(%arg0: i32, %arg1: memref<16x128xf32, #tpu.memory_space<vmem>>, %arg2: memref<16x128xi32, #tpu.memory_space<vmem>>, %arg3: memref<16x128xf32, #tpu.memory_space<vmem>>) attributes {dimension_semantics = [#tpu.dimension_semantics<parallel>], iteration_bounds = array<i64: 1>, scalar_prefetch = 0 : i64, scratch_operands = 0 : i64, tpu.core_type = #tpu.core_type<tc>, window_params = [{transform_indices = @transform_0, window_bounds = array<i64: 16, 128>}, {transform_indices = @transform_1, window_bounds = array<i64: 16, 128>}, {transform_indices = @transform_2, window_bounds = array<i64: 16, 128>}]} {
    %c0 = arith.constant 0 : index
    %c0_0 = arith.constant 0 : index
    %0 = vector.load %arg1[%c0, %c0_0] : memref<16x128xf32, #tpu.memory_space<vmem>>, vector<16x128xf32>
    %c0_1 = arith.constant 0 : index
    %c0_2 = arith.constant 0 : index
    %1 = vector.load %arg2[%c0_1, %c0_2] : memref<16x128xi32, #tpu.memory_space<vmem>>, vector<16x128xi32>
    %c-429496730_i32 = arith.constant -429496730 : i32
    %2 = vector.broadcast %c-429496730_i32 : i32 to vector<16x128xi32>
    %3 = arith.cmpi ult, %1, %2 : vector<16x128xi32>
    %cst = arith.constant 1.11111116 : f32
    %4 = vector.broadcast %cst : f32 to vector<16x128xf32>
    %5 = arith.mulf %0, %4 : vector<16x128xf32>
    %cst_3 = arith.constant 0.000000e+00 : f32
    %6 = vector.broadcast %cst_3 : f32 to vector<16x128xf32>
    %7 = arith.select %3, %5, %6 : vector<16x128xi1>, vector<16x128xf32>
    %cst_4 = arith.constant 5.000000e-01 : f32
    %8 = vector.broadcast %cst_4 : f32 to vector<16x128xf32>
    %9 = arith.mulf %8, %7 : vector<16x128xf32>
    %cst_5 = arith.constant 0.707106769 : f32
    %10 = vector.broadcast %cst_5 : f32 to vector<16x128xf32>
    %11 = arith.mulf %7, %10 : vector<16x128xf32>
    %12 = math.erf %11 : vector<16x128xf32>
    %cst_6 = arith.constant 1.000000e+00 : f32
    %13 = vector.broadcast %cst_6 : f32 to vector<16x128xf32>
    %14 = arith.addf %13, %12 : vector<16x128xf32>
    %15 = arith.mulf %9, %14 : vector<16x128xf32>
    %c0_7 = arith.constant 0 : index
    %c0_8 = arith.constant 0 : index
    %16 = vector.load %arg3[%c0_7, %c0_8] : memref<16x128xf32, #tpu.memory_space<vmem>>, vector<16x128xf32>
    tpu.vector_store %arg3[%c0_7, %c0_8], %15 {strides = array<i32>} : memref<16x128xf32, #tpu.memory_space<vmem>>, vector<16x128xf32>,
    return
  }
  func.func @transform_0(%arg0: i32) -> (i32, i32) {
    %c0_i32 = arith.constant 0 : i32
    %c0_i32_0 = arith.constant 0 : i32
    return %arg0, %c0_i32 : i32, i32
  }
  func.func @transform_1(%arg0: i32) -> (i32, i32) {
    %c0_i32 = arith.constant 0 : i32
    %c0_i32_0 = arith.constant 0 : i32
    return %arg0, %c0_i32 : i32, i32
  }
  func.func @transform_2(%arg0: i32) -> (i32, i32) {
    %c0_i32 = arith.constant 0 : i32
    %c0_i32_0 = arith.constant 0 : i32
    return %arg0, %c0_i32 : i32, i32
  }
}

</mosaic_0001>

<llo_original>
// kernel: dropout_gelu.1
$region0: #{dropout_gelu.1}
  #allocation0 [shape = 'u32[]', space=smem, size = 0x4, offset = 0x4, fixed_abs, tag = 'smem constant byte address 0x4 - core index']
  #allocation1 [shape = 'u32[72,128]{1,0:T(1,128)}', space=vmem, size = 0x9000, scoped, tag = 'internal scratch']
  %s0 = inlined_call_operand.vmem [shape: f32[16,128], index: 0, kind: input, shape index: {}]
  %s1 = inlined_call_operand.vmem [shape: u32[16,128], index: 1, kind: input, shape index: {}]
  %s2 = inlined_call_operand.hbm [shape: f32[16,128], index: 2, kind: output, shape index: {}]
  %s3 = sld [smem:[#allocation0]]
  $region18: #{dropout_gelu.1} parent=0
    _
  %s5 = ssub.s32 1, %s3
  %s6 = scalar_select 0, %s5, %s3
  $region1: #{dropout_gelu.1} parent=0
    #allocation2 [shape = 'u8[8192]{0}', space=vmem, size = 0x2000, scoped, tag = 'output window, operand 0, single buffered']
    #allocation3 [shape = 's32[1]{0}', space=sflag, size = 0x4, scoped, tag = 'scoped memory for dropout_gelu.1']
    %7 = vsyncpa [#allocation3], 0
    // Predicated region
    $region2: #{dropout_gelu.1} parent=1 // pred_check
      _
    $region3: #{dropout_gelu.1} parent=1 // pred_check_branch
      %9 = sbr.rel (0) target = $region5
    $region4: #{dropout_gelu.1} parent=1 // pred_region
      _
    $region5: #{dropout_gelu.1} parent=1 // pred_fallthru
      _
    // Predicated region
    $region6: #{dropout_gelu.1} parent=1 // pred_check
      _
    $region7: #{dropout_gelu.1} parent=1 // pred_check_branch
      %11 = sbr.rel (0) target = $region9
    $region8: #{dropout_gelu.1} parent=1 // pred_region
      _
    $region9: #{dropout_gelu.1} parent=1 // pred_fallthru
      _
    %v12 = vld [vmem:[%s0] sm:$0xff]
    %v13 = vld [vmem:[%s0 + $0x8] sm:$0xff]
    %v14 = vld [vmem:[%s1] sm:$0xff]
    %v15 = vld [vmem:[%s1 + $0x8] sm:$0xff]
    %v16 = vadd.s32 %v14, 2147483648
    %vm18 = vcmp.lt.s32.totalorder %v16, 1717986918
    %v19 = vadd.s32 %v15, 2147483648
    %vm21 = vcmp.lt.s32.totalorder %v19, 1717986918
    %v22 = vmul.f32 %v12, 1.1111112
    %v23 = vmul.f32 %v13, 1.1111112
    %v24 = vsel %vm18, %v22, 0.0
    %v25 = vsel %vm21, %v23, 0.0
    %v26 = vmul.f32 %v24, 0.5
    %v27 = vmul.f32 %v25, 0.5
    %v28 = vmul.f32 %v24, 0.70710677
    %v29 = vmul.f32 %v25, 0.70710677
    %v30 = vmul.f32 %v28, %v28
    %v31 = vmin.f32 16.0, %v30
    %v32 = vmul.f32 %v31, 2.1237322e-06
    %v33 = vadd.f32 %v32, 0.00028619796
    %v34 = vmul.f32 %v31, %v33
    %v35 = vadd.f32 %v34, 0.0036580483
    %v36 = vmul.f32 %v31, %v35
    %v37 = vadd.f32 %v36, 0.05243302
    %v38 = vmul.f32 %v31, %v37
    %v39 = vadd.f32 %v38, 0.18741608
    %v40 = vmul.f32 %v31, %v39
    %v41 = vadd.f32 %v40, 1.1283791
    %v42 = vmul.f32 %v28, %v41
    %v43 = vmul.f32 %v31, 3.8918573e-05
    %v44 = vadd.f32 %v43, 0.001143296
    %v45 = vmul.f32 %v31, %v44
    %v46 = vadd.f32 %v45, 0.014752088
    %v47 = vmul.f32 %v31, %v46
    %v48 = vadd.f32 %v47, 0.112945676
    %v49 = vmul.f32 %v31, %v48
    %v50 = vadd.f32 %v49, 0.4994258
    %v51 = vmul.f32 %v31, %v50
    %v52 = vadd.f32 %v51, 1.0
    %v53 = vrcp.pop %v52
    %v54 = vmul.f32 %v52, %v53
    %v55 = vsub.f32 1.0, %v54
    %v56 = vmul.f32 %v53, %v55
    %v57 = vadd.f32 %v53, %v56
    %vm58 = vweird.f32 %v52
    %vm59 = vweird.f32 %v53
    %vm60 = vmor %vm58, %vm59
    %v61 = vsel %vm60, %v53, %v57
    %v62 = vand.u32 2147483647, %v52
    %vm63 = vcmp.eq.f32.partialorder %v62, 8.507059e+37
    %v64 = vand.u32 %v52, 2147483648
    %v65 = vor.u32 1.1754944e-38, %v64
    %v66 = vsel %vm63, %v65, %v61
    %v67 = vmul.f32 %v42, %v66
    %v68 = vmin.f32 %v67, 1.0
    %v69 = vmax.f32 %v68, -1.0
    %v70 = vmul.f32 %v29, %v29
    %v71 = vmin.f32 16.0, %v70
    %v72 = vmul.f32 %v71, 2.1237322e-06
    %v73 = vadd.f32 %v72, 0.00028619796
    %v74 = vmul.f32 %v71, %v73
    %v75 = vadd.f32 %v74, 0.0036580483
    %v76 = vmul.f32 %v71, %v75
    %v77 = vadd.f32 %v76, 0.05243302
    %v78 = vmul.f32 %v71, %v77
    %v79 = vadd.f32 %v78, 0.18741608
    %v80 = vmul.f32 %v71, %v79
    %v81 = vadd.f32 %v80, 1.1283791
    %v82 = vmul.f32 %v29, %v81
    %v83 = vmul.f32 %v71, 3.8918573e-05
    %v84 = vadd.f32 %v83, 0.001143296
    %v85 = vmul.f32 %v71, %v84
    %v86 = vadd.f32 %v85, 0.014752088
    %v87 = vmul.f32 %v71, %v86
    %v88 = vadd.f32 %v87, 0.112945676
    %v89 = vmul.f32 %v71, %v88
    %v90 = vadd.f32 %v89, 0.4994258
    %v91 = vmul.f32 %v71, %v90
    %v92 = vadd.f32 %v91, 1.0
    %v93 = vrcp.pop %v92
    %v94 = vmul.f32 %v92, %v93
    %v95 = vsub.f32 1.0, %v94
    %v96 = vmul.f32 %v93, %v95
    %v97 = vadd.f32 %v93, %v96
    %vm98 = vweird.f32 %v92
    %vm99 = vweird.f32 %v93
    %vm100 = vmor %vm98, %vm99
    %v101 = vsel %vm100, %v93, %v97
    %v102 = vand.u32 2147483647, %v92
    %vm103 = vcmp.eq.f32.partialorder %v102, 8.507059e+37
    %v104 = vand.u32 %v92, 2147483648
    %v105 = vor.u32 1.1754944e-38, %v104
    %v106 = vsel %vm103, %v105, %v101
    %v107 = vmul.f32 %v82, %v106
    %v108 = vmin.f32 %v107, 1.0
    %v109 = vmax.f32 %v108, -1.0
    %v110 = vadd.f32 %v69, 1.0
    %v111 = vadd.f32 %v109, 1.0
    %v112 = vmul.f32 %v26, %v110
    %v113 = vmul.f32 %v27, %v111
    %114 = vst [vmem:[#allocation2] sm:$0xff] %v112
    %115 = vst [vmem:[#allocation2 + $0x8] sm:$0xff] %v113
    // Predicated region
    $region10: #{dropout_gelu.1} parent=1 // pred_check
      _
    $region11: #{dropout_gelu.1} parent=1 // pred_check_branch
      %117 = sbr.rel (0) target = $region13
    $region12: #{dropout_gelu.1} parent=1 // pred_region
      %119 = vsyncadd [#allocation3], 0
      %s120 = sshll.u32 [#allocation2], 4
      %s121 = int_to_ptr.vmem [resolvable:$true] %s120
      %s122 = sshll.u32 %s2, 4
      %s123 = int_to_ptr.hbm [resolvable:$true] %s122
      %128 = dma.vmem_to_hbm [thread:$0]  %s121, 256, %s123, [#allocation3], 128, 128, 8
    $region13: #{dropout_gelu.1} parent=1 // pred_fallthru
      _
    // Predicated region
    $region14: #{dropout_gelu.1} parent=1 // pred_check
      _
    $region15: #{dropout_gelu.1} parent=1 // pred_check_branch
      %130 = sbr.rel (0) target = $region17
    $region16: #{dropout_gelu.1} parent=1 // pred_region
      %132 = dma.done [#allocation3], 256
    $region17: #{dropout_gelu.1} parent=1 // pred_fallthru
      _
    %133 = vsyncpa [#allocation3], 1

</llo_original>
